<compile_context>
chip_gen: v7x
topology: tpu7x:2x2x1
jax: 0.10.0
libtpu: 0.0.40
codegen_flags: <defaults>
</compile_context>

<pallas_src>
import functools

import jax
import jax.numpy as jnp
from jax.experimental import pallas as pl
from jax.experimental.pallas import tpu as pltpu

EPS = 1e-6
SCALE = 0.09


def _cos_linear_kernel(x_ref, wt_ref, o_ref, *, inv_scale):
    """x_ref: (tm, D); wt_ref: (D, tn) = W^T (classes on lanes); o_ref: (tm, tn)."""
    x = x_ref[...]
    wt = wt_ref[...]
    # Raw matmul on the MXU (f32 accumulation).
    acc = jnp.dot(x, wt, preferred_element_type=jnp.float32)
    # Epilogue: fold row/col L2 norms and the 1/scale into the output tile.
    inv_xn = inv_scale / (jnp.sqrt(jnp.sum(x * x, axis=1, keepdims=True)) + EPS)   # (tm, 1)
    inv_wn = 1.0 / (jnp.sqrt(jnp.sum(wt * wt, axis=0, keepdims=True)) + EPS)       # (1, tn)
    o_ref[...] = acc * inv_xn * inv_wn


def _round_up(a, b):
    return (a + b - 1) // b * b


def _pick_tiles(n, c, d, vmem_budget_bytes=48 * 1024 * 1024):
    """Choose (tm, tn) so the f32 double-buffered footprint fits comfortably in VMEM."""
    tm = min(256, _round_up(n, 8))
    tn = min(512, _round_up(c, 128))

    def footprint(tm_, tn_):
        # 2x buffering of x-tile, w^T-tile, out-tile in f32.
        return 4 * 2 * (tm_ * d + d * tn_ + tm_ * tn_)

    while footprint(tm, tn) > vmem_budget_bytes and tn > 128:
        tn //= 2
    while footprint(tm, tn) > vmem_budget_bytes and tm > 8:
        tm //= 2
    return tm, tn


def cos_linear(x, weight, *, scale=SCALE):
    """x: (N, indim); weight: (outdim, indim) -> scores (N, outdim), float32."""
    n, d = x.shape
    c, d2 = weight.shape
    assert d == d2, (d, d2)
    x = x.astype(jnp.float32)
    weight = weight.astype(jnp.float32)

    tm, tn = _pick_tiles(n, c, d)
    n_pad = _round_up(n, tm)
    c_pad = _round_up(c, tn)

    # Zero-padded rows/classes have zero norm and zero dot products -> exact zeros, sliced off.
    xp = jnp.pad(x, ((0, n_pad - n), (0, 0)))
    wt = jnp.pad(weight, ((0, c_pad - c), (0, 0))).T        # (d, c_pad): lane-dense classes

    grid = (n_pad // tm, c_pad // tn)
    out = pl.pallas_call(
        functools.partial(_cos_linear_kernel, inv_scale=1.0 / scale),
        out_shape=jax.ShapeDtypeStruct((n_pad, c_pad), jnp.float32),
        grid_spec=pltpu.PrefetchScalarGridSpec(
            num_scalar_prefetch=0,
            grid=grid,
            in_specs=[
                pl.BlockSpec((tm, d), lambda i, j: (i, 0)),   # x row tile, full feature dim
                pl.BlockSpec((d, tn), lambda i, j: (0, j)),   # W^T class tile, full feature dim
            ],
            out_specs=pl.BlockSpec((tm, tn), lambda i, j: (i, j)),
        ),
        compiler_params=pltpu.CompilerParams(
            dimension_semantics=("parallel", "parallel")),
        cost_estimate=pl.CostEstimate(
            flops=2 * n_pad * c_pad * d,
            transcendentals=0,
            bytes_accessed=4 * (n_pad * d + d * c_pad + n_pad * c_pad)),
    )(xp, wt)
    return out[:n, :c]


if __name__ == "__main__":
    key = jax.random.PRNGKey(0)
    kx, kw = jax.random.split(key)

    batch, indim, outdim = 8, 32, 16
    x = jax.random.normal(kx, (batch, indim), jnp.float32)
    w = jax.random.normal(kw, (outdim, indim), jnp.float32) * 0.1   # nn.Linear weight (out, in)

    scores = jax.block_until_ready(cos_linear(x, w))

    # Pure-JAX reference in the exact PyTorch op order.
    xn = x / (jnp.linalg.norm(x, axis=1, keepdims=True) + EPS)
    wn = w / (jnp.linalg.norm(w, axis=1, keepdims=True) + EPS)
    ref = (xn @ wn.T) / SCALE

    assert scores.shape == (batch, outdim), scores.shape
    assert bool(jnp.all(jnp.isfinite(scores)))
    assert bool(jnp.allclose(scores, ref, atol=1e-1, rtol=1e-2)), \
        float(jnp.max(jnp.abs(scores - ref)))
    print("KERNEL_OK")
</pallas_src>

<mosaic_0001>
module attributes {stable_mosaic.version = 11 : i64} {
  func.func @_cos_linear_kernel(%arg0: i32, %arg1: i32, %arg2: memref<8x32xf32, #tpu.memory_space<vmem>>, %arg3: memref<32x128xf32, #tpu.memory_space<vmem>>, %arg4: memref<8x128xf32, #tpu.memory_space<vmem>>) attributes {dimension_semantics = [#tpu.dimension_semantics<parallel>, #tpu.dimension_semantics<parallel>], iteration_bounds = array<i64: 1, 1>, scalar_prefetch = 0 : i64, scratch_operands = 0 : i64, tpu.core_type = #tpu.core_type<tc>, window_params = [{transform_indices = @transform_0, window_bounds = array<i64: 8, 32>}, {transform_indices = @transform_1, window_bounds = array<i64: 32, 128>}, {transform_indices = @transform_2, window_bounds = array<i64: 8, 128>}]} {
    %c0 = arith.constant 0 : index
    %c0_0 = arith.constant 0 : index
    %0 = vector.load %arg2[%c0, %c0_0] : memref<8x32xf32, #tpu.memory_space<vmem>>, vector<8x32xf32>
    %c0_1 = arith.constant 0 : index
    %c0_2 = arith.constant 0 : index
    %1 = vector.load %arg3[%c0_1, %c0_2] : memref<32x128xf32, #tpu.memory_space<vmem>>, vector<32x128xf32>
    %cst = arith.constant dense<0.000000e+00> : vector<8x128xf32>
    %2 = tpu.matmul %0, %1, %cst {dimension_numbers = #tpu.dot_dimension_numbers<[1], [0], [0], [1], [0, 0, 1, 1], [], []>} : vector<8x32xf32>, vector<32x128xf32>, vector<8x128xf32> -> vector<8x128xf32>
    %3 = arith.mulf %0, %0 : vector<8x32xf32>
    %cst_3 = arith.constant dense<0.000000e+00> : vector<8xf32>
    %4 = vector.multi_reduction <add>, %3, %cst_3 [1] : vector<8x32xf32> to vector<8xf32>
    %5 = vector.shape_cast %4 : vector<8xf32> to vector<8x1xf32>
    %6 = math.sqrt %5 : vector<8x1xf32>
    %cst_4 = arith.constant 9.99999997E-7 : f32
    %7 = vector.broadcast %cst_4 : f32 to vector<8x1xf32>
    %8 = arith.addf %6, %7 : vector<8x1xf32>
    %cst_5 = arith.constant 11.1111107 : f32
    %9 = vector.broadcast %cst_5 : f32 to vector<8x1xf32>
    %10 = arith.divf %9, %8 : vector<8x1xf32>
    %11 = arith.mulf %1, %1 : vector<32x128xf32>
    %cst_6 = arith.constant dense<0.000000e+00> : vector<128xf32>
    %12 = vector.multi_reduction <add>, %11, %cst_6 [0] : vector<32x128xf32> to vector<128xf32>
    %13 = vector.shape_cast %12 : vector<128xf32> to vector<1x128xf32>
    %14 = math.sqrt %13 : vector<1x128xf32>
    %cst_7 = arith.constant 9.99999997E-7 : f32
    %15 = vector.broadcast %cst_7 : f32 to vector<1x128xf32>
    %16 = arith.addf %14, %15 : vector<1x128xf32>
    %cst_8 = arith.constant 1.000000e+00 : f32
    %17 = vector.broadcast %cst_8 : f32 to vector<1x128xf32>
    %18 = arith.divf %17, %16 : vector<1x128xf32>
    %19 = vector.broadcast %10 : vector<8x1xf32> to vector<8x128xf32>
    %20 = arith.mulf %2, %19 : vector<8x128xf32>
    %21 = vector.broadcast %18 : vector<1x128xf32> to vector<8x128xf32>
    %22 = arith.mulf %20, %21 : vector<8x128xf32>
    %c0_9 = arith.constant 0 : index
    %c0_10 = arith.constant 0 : index
    %23 = vector.load %arg4[%c0_9, %c0_10] : memref<8x128xf32, #tpu.memory_space<vmem>>, vector<8x128xf32>
    tpu.vector_store %arg4[%c0_9, %c0_10], %22 {strides = array<i32>} : memref<8x128xf32, #tpu.memory_space<vmem>>, vector<8x128xf32>,
    return
  }
  func.func @transform_0(%arg0: i32, %arg1: i32) -> (i32, i32) {
    %c0_i32 = arith.constant 0 : i32
    %c0_i32_0 = arith.constant 0 : i32
    return %arg0, %c0_i32 : i32, i32
  }
  func.func @transform_1(%arg0: i32, %arg1: i32) -> (i32, i32) {
    %c0_i32 = arith.constant 0 : i32
    %c0_i32_0 = arith.constant 0 : i32
    return %c0_i32, %arg1 : i32, i32
  }
  func.func @transform_2(%arg0: i32, %arg1: i32) -> (i32, i32) {
    %c0_i32 = arith.constant 0 : i32
    return %arg0, %arg1 : i32, i32
  }
}

</mosaic_0001>

<llo_original>
// kernel: tpu_custom_call.1
$region0: #{tpu_custom_call.1}
  #allocation0 [shape = 'u32[]', space=smem, size = 0x4, offset = 0x4, fixed_abs, tag = 'smem constant byte address 0x4 - core index']
  #allocation1 [shape = 'u32[144,128]{1,0:T(1,128)}', space=vmem, size = 0x12000, scoped, tag = 'internal scratch']
  %s0 = inlined_call_operand.hbm [shape: f32[8,32], index: 0, kind: input, shape index: {}]
  %s1 = inlined_call_operand.hbm [shape: f32[32,128], index: 1, kind: input, shape index: {}]
  %s2 = inlined_call_operand.hbm [shape: f32[8,128], index: 2, kind: output, shape index: {}]
  %s3 = sld [smem:[#allocation0]]
  $region26: #{tpu_custom_call.1} parent=0
    _
  %s5 = ssub.s32 1, %s3
  %s6 = scalar_select 0, %s5, %s3
  $region1: #{tpu_custom_call.1} parent=0
    #allocation2 [shape = 'u8[4096]{0}', space=vmem, size = 0x1000, scoped, tag = 'input window, operand 0, single buffered']
    #allocation3 [shape = 's32[1]{0}', space=sflag, size = 0x4, scoped, tag = 'scoped memory for tpu_custom_call.1']
    #allocation4 [shape = 's32[1]{0}', space=sflag, size = 0x4, scoped, tag = 'scoped memory for tpu_custom_call.1']
    #allocation5 [shape = 'u8[16384]{0}', space=vmem, size = 0x4000, scoped, tag = 'input window, operand 1, single buffered']
    #allocation6 [shape = 's32[1]{0}', space=sflag, size = 0x4, scoped, tag = 'scoped memory for tpu_custom_call.1']
    #allocation7 [shape = 'u8[4096]{0}', space=vmem, size = 0x1000, scoped, tag = 'output window, operand 0, single buffered']
    %7 = vsyncpa [#allocation3], 0
    %8 = vsyncpa [#allocation6], 0
    %9 = vsyncpa [#allocation4], 0
    // Predicated region
    $region2: #{tpu_custom_call.1} parent=1 // pred_check
      _
    $region3: #{tpu_custom_call.1} parent=1 // pred_check_branch
      %11 = sbr.rel (0) target = $region5
    $region4: #{tpu_custom_call.1} parent=1 // pred_region
      %s13 = ssub.s32 128, 128
      %14 = vsyncadd [#allocation3], %s13
      %s16 = sshll.u32 [#allocation2], 4
      %s17 = int_to_ptr.vmem [resolvable:$true] %s16
      %19 = dma.hbm_to_vmem [thread:$0]  %s0, 128, %s17, [#allocation3]
    $region5: #{tpu_custom_call.1} parent=1 // pred_fallthru
      _
    // Predicated region
    $region6: #{tpu_custom_call.1} parent=1 // pred_check
      _
    $region7: #{tpu_custom_call.1} parent=1 // pred_check_branch
      %21 = sbr.rel (0) target = $region9
    $region8: #{tpu_custom_call.1} parent=1 // pred_region
      %s23 = ssub.s32 512, 512
      %24 = vsyncadd [#allocation6], %s23
      %s25 = sshll.u32 [#allocation5], 4
      %s26 = int_to_ptr.vmem [resolvable:$true] %s25
      %31 = dma.hbm_to_vmem [thread:$0]  %s1, 512, %s26, [#allocation6], 128, 128, 8
    $region9: #{tpu_custom_call.1} parent=1 // pred_fallthru
      _
    // Predicated region
    $region10: #{tpu_custom_call.1} parent=1 // pred_check
      _
    $region11: #{tpu_custom_call.1} parent=1 // pred_check_branch
      %33 = sbr.rel (0) target = $region13
    $region12: #{tpu_custom_call.1} parent=1 // pred_region
      %34 = dma.done [#allocation3], 128
    $region13: #{tpu_custom_call.1} parent=1 // pred_fallthru
      _
    // Predicated region
    $region14: #{tpu_custom_call.1} parent=1 // pred_check
      _
    $region15: #{tpu_custom_call.1} parent=1 // pred_check_branch
      %36 = sbr.rel (0) target = $region17
    $region16: #{tpu_custom_call.1} parent=1 // pred_region
      %37 = dma.done [#allocation6], 512
    $region17: #{tpu_custom_call.1} parent=1 // pred_fallthru
      _
    %v38 = vld [vmem:[#allocation2] sm:$0xff]
    %v39 = vld [vmem:[#allocation5] sm:$0xff]
    %v40 = vld [vmem:[#allocation5 + $0x8] sm:$0xff]
    %v41 = vld [vmem:[#allocation5 + $0x10] sm:$0xff]
    %v42 = vld [vmem:[#allocation5 + $0x18] sm:$0xff]
    %vm43 = vcmask 261120
    %v45 = vsel %vm43, %v38, 0
    %47 = vmatprep.subr.mxu0 0.0
    %48 = vmatpush1.msra.mxu0 %v39
    %49 = vmatprep.subr.mxu0 0.0
    %50 = vmatpush1.msra.mxu0 %v40
    %51 = vmatprep.subr.mxu0 0.0
    %52 = vmatpush1.msra.mxu0 %v41
    %53 = vmatprep.subr.mxu0 0.0
    %54 = vmatpush1.msra.mxu0 %v42
    %55 = vmatprep.subr.mxu0 0.0
    %56 = vmatpush1.msra.mxu0 0.0
    %57 = vmatprep.subr.mxu0 0.0
    %58 = vmatpush1.msra.mxu0 0.0
    %59 = vmatprep.subr.mxu0 0.0
    %60 = vmatpush1.msra.mxu0 0.0
    %61 = vmatprep.subr.mxu0 0.0
    %62 = vmatpush1.msra.mxu0 0.0
    %63 = vmatprep.subr.mxu0 0.0
    %64 = vmatpush1.msra.mxu0 0.0
    %65 = vmatprep.subr.mxu0 0.0
    %66 = vmatpush1.msra.mxu0 0.0
    %67 = vmatprep.subr.mxu0 0.0
    %68 = vmatpush1.msra.mxu0 0.0
    %69 = vmatprep.subr.mxu0 0.0
    %70 = vmatpush1.msra.mxu0 0.0
    %71 = vmatprep.subr.mxu0 0.0
    %72 = vmatpush1.msra.mxu0 0.0
    %73 = vmatprep.subr.mxu0 0.0
    %74 = vmatpush1.msra.mxu0 0.0
    %75 = vmatprep.subr.mxu0 0.0
    %76 = vmatpush1.msra.mxu0 0.0
    %77 = vmatprep.subr.mxu0 0.0
    %78 = vmatpush1.msra.mxu0 0.0
    %79 = vmatprep.subr.mxu0 0.0
    %80 = vmatpush1.msra.mxu0 0.0
    %81 = vmatprep.subr.mxu0 0.0
    %82 = vmatpush1.msra.mxu0 0.0
    %83 = vmatprep.subr.mxu0 0.0
    %84 = vmatpush1.msra.mxu0 0.0
    %85 = vmatprep.subr.mxu0 0.0
    %86 = vmatpush1.msra.mxu0 0.0
    %87 = vmatprep.subr.mxu0 0.0
    %88 = vmatpush1.msra.mxu0 0.0
    %89 = vmatprep.subr.mxu0 0.0
    %90 = vmatpush1.msra.mxu0 0.0
    %91 = vmatprep.subr.mxu0 0.0
    %92 = vmatpush1.msra.mxu0 0.0
    %93 = vmatprep.subr.mxu0 0.0
    %94 = vmatpush1.msra.mxu0 0.0
    %95 = vmatprep.subr.mxu0 0.0
    %96 = vmatpush1.msra.mxu0 0.0
    %97 = vmatprep.subr.mxu0 0.0
    %98 = vmatpush1.msra.mxu0 0.0
    %99 = vmatprep.subr.mxu0 0.0
    %100 = vmatpush1.msra.mxu0 0.0
    %101 = vmatprep.subr.mxu0 0.0
    %102 = vmatpush1.msra.mxu0 0.0
    %103 = vmatprep.subr.mxu0 0.0
    %104 = vmatpush1.msra.mxu0 0.0
    %105 = vmatprep.subr.mxu0 0.0
    %106 = vmatpush1.msra.mxu0 0.0
    %107 = vmatprep.subr.mxu0 0.0
    %108 = vmatpush1.msra.mxu0 0.0
    %109 = vmatprep.subr.mxu0 0.0
    %110 = vmatpush1.msra.mxu0 0.0
    %111 = vmatprep.mubr.f32.mxu0 0.0
    %112 = vmatmul.mubr.f32.gmra.mrb[0].mxu0 %v45
    %v113 = vpop.f32.mrb[0].mxu0
    %v114 = vadd.f32 0.0, %v113
    %v115 = vpop.f32.mrb[0].mxu0
    %116 = vdwg.mxu0
    %v117 = vmul.f32 %v38, %v38
    %v118 = vsel %vm43, %v117, 0.0
    %119 = vadd.xlane.f32.xlu0 %v118
    %v120 = vpop.xlane.xlu0 %119
    %v121 = vrsqrt.pop %v120
    %v122 = vmul.f32 %v120, %v121
    %vm123 = vcmp.eq.f32.partialorder %v120, inf
    %v124 = vsel %vm123, %v120, %v122
    %vm125 = vcmp.eq.f32.partialorder %v120, 0.0
    %v126 = vand.u32 %v120, 2147483648
    %v127 = vsel %vm125, %v126, %v124
    %v128 = vadd.f32 %v127, 1e-06
    %v129 = vrcp.pop %v128
    %v130 = vmul.f32 11.111111, %v129
    %v131 = vmul.f32 %v39, %v39
    %v132 = vmul.f32 %v40, %v40
    %v133 = vmul.f32 %v41, %v41
    %v134 = vmul.f32 %v42, %v42
    %v135 = vadd.f32 %v131, %v132
    %v136 = vadd.f32 %v135, %v133
    %v137 = vadd.f32 %v136, %v134
    %v138 = vrot.slane %v137, 4
    %v139 = vadd.f32 %v137, %v138
    %v140 = vrot.slane %v139, 2
    %v141 = vadd.f32 %v139, %v140
    %v142 = vrot.slane %v141, 1
    %v143 = vadd.f32 %v141, %v142
    %v144 = vrsqrt.pop %v143
    %v145 = vmul.f32 %v143, %v144
    %vm146 = vcmp.eq.f32.partialorder %v143, inf
    %v147 = vsel %vm146, %v143, %v145
    %vm148 = vcmp.eq.f32.partialorder %v143, 0.0
    %v149 = vand.u32 %v143, 2147483648
    %v150 = vsel %vm148, %v149, %v147
    %v151 = vadd.f32 %v150, 1e-06
    %v152 = vrcp.pop %v151
    %v153 = vmul.f32 1.0, %v152
    %v154 = vmul.f32 %v114, %v130
    %v155 = vmul.f32 %v154, %v153
    %156 = vst [vmem:[#allocation7] sm:$0xff] %v155
    // Predicated region
    $region18: #{tpu_custom_call.1} parent=1 // pred_check
      _
    $region19: #{tpu_custom_call.1} parent=1 // pred_check_branch
      %158 = sbr.rel (0) target = $region21
    $region20: #{tpu_custom_call.1} parent=1 // pred_region
      %s160 = ssub.s32 128, 128
      %161 = vsyncadd [#allocation4], %s160
      %s163 = sshll.u32 [#allocation7], 4
      %s164 = int_to_ptr.vmem [resolvable:$true] %s163
      %166 = dma.vmem_to_hbm [thread:$0]  %s164, 128, %s2, [#allocation4]
    $region21: #{tpu_custom_call.1} parent=1 // pred_fallthru
      _
    // Predicated region
    $region22: #{tpu_custom_call.1} parent=1 // pred_check
      _
    $region23: #{tpu_custom_call.1} parent=1 // pred_check_branch
      %168 = sbr.rel (0) target = $region25
    $region24: #{tpu_custom_call.1} parent=1 // pred_region
      %169 = dma.done [#allocation4], 128
    $region25: #{tpu_custom_call.1} parent=1 // pred_fallthru
      _
    %170 = vsyncpa [#allocation3], 1
    %171 = vsyncpa [#allocation6], 1
    %172 = vsyncpa [#allocation4], 1

</llo_original>
